<compile_context>
chip_gen: v7x
topology: tpu7x:2x2x1
jax: 0.10.0
libtpu: 0.0.40
codegen_flags: <defaults>
</compile_context>

<pallas_src>
import functools

import jax
import jax.numpy as jnp
from jax import lax
from jax.experimental import pallas as pl
from jax.experimental.pallas import tpu as pltpu

_LANE = 128


def _block_gram_kernel(x_ref, o_ref, *, c, chunk, tile_d, num_k, d_total):
    """Accumulate the block-stacked self-Gram of one (rank, tile_d) tile."""
    p = pl.program_id(0)          # core-split axis ("parallel")
    k = pl.program_id(1)          # D-reduction axis ("arbitrary")

    @pl.when(k == 0)
    def _init():
        o_ref[...] = jnp.zeros_like(o_ref)

    x = x_ref[...]                # (rank, tile_d), input dtype preserved
    rank = x.shape[0]

    # Zero columns past the real array end: handles the overhanging last tile
    # and any duplicate tile handed to the second core when the tile count is
    # odd (its computed start is >= d_total, so everything is masked).
    start = (p * num_k + k) * tile_d
    col = lax.broadcasted_iota(jnp.int32, (1, tile_d), 1)
    x = jnp.where(col < (d_total - start), x, jnp.zeros_like(x))

    # Stack `c` lane-chunks along sublanes -> (rank*c, chunk).  chunk is a
    # multiple of 128, so these are whole-vreg moves.  This widens the MXU
    # matmul so weights amortize over many LHS pushes.
    if c > 1:
        z = jnp.concatenate(
            [x[:, j * chunk:(j + 1) * chunk] for j in range(c)], axis=0)
    else:
        z = x

    # Z @ Z^T, f32 accumulation.  Off-diagonal rank x rank blocks are
    # discarded in the epilogue (the MXU computes the full output width per
    # push anyway, so they are essentially free).
    o_ref[...] += lax.dot_general(
        z, z,
        dimension_numbers=(((1,), (1,)), ((), ())),
        preferred_element_type=jnp.float32,
    )[None]


def _choose_tiling(D, max_tile_d, stack):
    lane_groups = -(-D // _LANE)                     # 128-lane groups covering D
    max_groups_per_tile = max(1, max_tile_d // _LANE)
    c = max(1, min(stack, lane_groups, max_groups_per_tile))
    chunk_groups = min(max(1, max_groups_per_tile // c), -(-lane_groups // c))
    chunk = chunk_groups * _LANE
    tile_d = c * chunk
    num_tiles = -(-D // tile_d)
    return c, chunk, tile_d, num_tiles


def pairwise_angular_regularization_t(Xt, rank, threshold=0.0, *,
                                      max_tile_d=131072, stack=16):
    """Lane-dense entry point.  Xt: (rank, D) — the module's X transposed."""
    if threshold == 1:
        # Matches the PyTorch module's early-return branch.
        return jnp.zeros((), dtype=jnp.float32)

    R, D = Xt.shape
    assert R == rank, "first dim of Xt must equal `rank`"
    assert rank >= 2, "rank*(rank-1) denominator requires rank >= 2"

    c, chunk, tile_d, num_tiles = _choose_tiling(D, int(max_tile_d), int(stack))
    n_split = 2 if num_tiles >= 2 else 1             # use both TCs on v7x
    num_k = pl.cdiv(num_tiles, n_split)
    rc = rank * c

    kernel = functools.partial(_block_gram_kernel, c=c, chunk=chunk,
                               tile_d=tile_d, num_k=num_k, d_total=D)
    itemsize = jnp.dtype(Xt.dtype).itemsize

    big_gram = pl.pallas_call(
        kernel,
        out_shape=jax.ShapeDtypeStruct((n_split, rc, rc), jnp.float32),
        grid=(n_split, num_k),
        in_specs=[pl.BlockSpec(
            (rank, tile_d),
            # Clamp so no block index points wholly past the array (masking
            # already zeroes any duplicated/out-of-range contribution).
            lambda p, k: (0, jnp.minimum(p * num_k + k, num_tiles - 1)))],
        out_specs=pl.BlockSpec((1, rc, rc), lambda p, k: (p, 0, 0)),
        compiler_params=pltpu.CompilerParams(
            dimension_semantics=("parallel", "arbitrary"),
            vmem_limit_bytes=32 * 1024 * 1024),
        cost_estimate=pl.CostEstimate(
            flops=2 * rank * rank * D,
            transcendentals=0,
            bytes_accessed=rank * D * itemsize + n_split * rc * rc * 4),
    )(Xt)

    # ---- tiny epilogue in plain JAX: O(stack * rank^2) work ----
    gb = jnp.sum(big_gram, axis=0)                            # (rc, rc)
    gb4 = gb.reshape(c, rank, c, rank)
    gram = gb4[jnp.arange(c), :, jnp.arange(c), :].sum(axis=0)  # (rank, rank) = X^T X
    norms = jnp.sqrt(jnp.diagonal(gram))                      # ||X[:, i]||
    inv = 1.0 / (norms + 1e-15)
    cos = gram * inv[:, None] * inv[None, :]
    cos = cos - jnp.eye(rank, dtype=jnp.float32) - jnp.float32(threshold)
    cos = jnp.where(cos > 0, cos, jnp.zeros_like(cos))
    return jnp.sum(cos) / (rank * (rank - 1))


def pairwise_angular_regularization(X, rank, threshold=0.0, *,
                                    max_tile_d=131072, stack=16):
    """JAX/Pallas equivalent of PairwiseAngularRegularization.forward.

    X: (D, rank) in the module's natural layout.  Returns a scalar f32.
    NOTE: this pays one XLA transpose pass over X; callers with very large D
    should keep X as (rank, D) and use pairwise_angular_regularization_t.
    """
    if threshold == 1:
        return jnp.zeros((), dtype=jnp.float32)
    return pairwise_angular_regularization_t(
        jnp.transpose(X), rank, threshold, max_tile_d=max_tile_d, stack=stack)


def _reference(X, rank, threshold=0.0):
    """Pure-JAX reference mirroring the PyTorch module exactly."""
    if threshold == 1:
        return jnp.zeros((), jnp.float32)
    Xf = X.astype(jnp.float32)
    normalized = Xf / (jnp.linalg.norm(Xf, axis=0) + 1e-15)
    cos_sim = normalized.T @ normalized - jnp.eye(rank, dtype=jnp.float32) - threshold
    cos_sim = jnp.where(cos_sim > 0, cos_sim, jnp.zeros_like(cos_sim))
    return cos_sim.sum() / (rank * (rank - 1))


if __name__ == "__main__":
    rank = 8
    key = jax.random.PRNGKey(0)
    k1, k2, k3 = jax.random.split(key, 3)

    # 1) Module's natural small shape: single tile, in-kernel tail masking
    #    (D=32 inside a 128-wide block, no jnp.pad).
    D1 = 32
    X1 = jax.random.normal(k1, (D1, rank), dtype=jnp.float32)
    got1 = jax.block_until_ready(pairwise_angular_regularization(X1, rank, 0.0))
    ref1 = jax.block_until_ready(_reference(X1, rank, 0.0))
    assert jnp.allclose(got1, ref1, atol=2e-5, rtol=2e-5), (got1, ref1)

    # 2) Multi-tile D reduction + sublane stacking (c=2) + 2-way core split +
    #    nonzero threshold + overhanging last tile (D=300, tile_d=256).
    D2 = 300
    X2 = jax.random.normal(k2, (D2, rank), dtype=jnp.float32)
    got2 = jax.block_until_ready(
        pairwise_angular_regularization(X2, rank, 0.1, max_tile_d=256, stack=2))
    ref2 = jax.block_until_ready(_reference(X2, rank, 0.1))
    assert jnp.allclose(got2, ref2, atol=2e-5, rtol=2e-5), (got2, ref2)

    # 3) Exact multiple of the tile (no masking), chunk > 128, c=4.
    D3 = 2048
    X3 = jax.random.normal(k3, (D3, rank), dtype=jnp.float32)
    got3 = jax.block_until_ready(
        pairwise_angular_regularization(X3, rank, 0.0, max_tile_d=1024, stack=4))
    ref3 = jax.block_until_ready(_reference(X3, rank, 0.0))
    assert jnp.allclose(got3, ref3, atol=2e-5, rtol=2e-5), (got3, ref3)

    # 4) threshold == 1 early-return branch.
    got4 = jax.block_until_ready(pairwise_angular_regularization(X1, rank, 1))
    assert float(got4) == 0.0

    print("KERNEL_OK")
</pallas_src>

<mosaic_0001>
module attributes {stable_mosaic.version = 11 : i64} {
  func.func @_block_gram_kernel(%arg0: i32, %arg1: i32, %arg2: memref<8x128xf32, #tpu.memory_space<vmem>>, %arg3: memref<1x8x8xf32, #tpu.memory_space<vmem>>) attributes {dimension_semantics = [#tpu.dimension_semantics<parallel>, #tpu.dimension_semantics<arbitrary>], iteration_bounds = array<i64: 1, 1>, scalar_prefetch = 0 : i64, scratch_operands = 0 : i64, tpu.core_type = #tpu.core_type<tc>, window_params = [{transform_indices = @transform_0, window_bounds = array<i64: 8, 128>}, {transform_indices = @transform_1, window_bounds = array<i64: 1, 8, 8>}]} {
    %c0_i32 = arith.constant 0 : i32
    %0 = arith.cmpi eq, %arg1, %c0_i32 : i32
    %1 = arith.extui %0 : i1 to i32
    %c0_i32_0 = arith.constant 0 : i32
    %2 = arith.cmpi ne, %1, %c0_i32_0 : i32
    scf.if %2 {
      %cst_9 = arith.constant 0.000000e+00 : f32
      %20 = vector.broadcast %cst_9 : f32 to vector<1x8x8xf32>
      %c0_10 = arith.constant 0 : index
      %c0_11 = arith.constant 0 : index
      %c0_12 = arith.constant 0 : index
      %21 = vector.load %arg3[%c0_10, %c0_11, %c0_12] : memref<1x8x8xf32, #tpu.memory_space<vmem>>, vector<1x8x8xf32>
      tpu.vector_store %arg3[%c0_10, %c0_11, %c0_12], %20 {strides = array<i32>} : memref<1x8x8xf32, #tpu.memory_space<vmem>>, vector<1x8x8xf32>,
    } else {
    }
    %c0 = arith.constant 0 : index
    %c0_1 = arith.constant 0 : index
    %3 = vector.load %arg2[%c0, %c0_1] : memref<8x128xf32, #tpu.memory_space<vmem>>, vector<8x128xf32>
    %c1_i32 = arith.constant 1 : i32
    %4 = arith.muli %arg0, %c1_i32 : i32
    %5 = arith.addi %4, %arg1 : i32
    %c128_i32 = arith.constant 128 : i32
    %6 = arith.muli %5, %c128_i32 : i32
    %7 = tpu.iota {dimensions = array<i32: 1>} : vector<1x128xi32>
    %c32_i32 = arith.constant 32 : i32
    %8 = arith.subi %c32_i32, %6 : i32
    %9 = vector.broadcast %8 : i32 to vector<1x128xi32>
    %10 = arith.cmpi slt, %7, %9 : vector<1x128xi32>
    %cst = arith.constant 0.000000e+00 : f32
    %11 = vector.broadcast %cst : f32 to vector<8x128xf32>
    %12 = vector.shape_cast %10 : vector<1x128xi1> to vector<1x128xi1>
    %13 = vector.broadcast %12 : vector<1x128xi1> to vector<8x128xi1>
    %14 = arith.select %13, %3, %11 : vector<8x128xi1>, vector<8x128xf32>
    %c0_2 = arith.constant 0 : index
    %c0_3 = arith.constant 0 : index
    %c0_4 = arith.constant 0 : index
    %15 = vector.load %arg3[%c0_2, %c0_3, %c0_4] : memref<1x8x8xf32, #tpu.memory_space<vmem>>, vector<1x8x8xf32>
    %cst_5 = arith.constant dense<0.000000e+00> : vector<8x8xf32>
    %16 = tpu.matmul %14, %14, %cst_5 {dimension_numbers = #tpu.dot_dimension_numbers<[1], [1], [0], [0], [0, 0, 1, 0], [], []>} : vector<8x128xf32>, vector<8x128xf32>, vector<8x8xf32> -> vector<8x8xf32>
    %17 = vector.shape_cast %16 : vector<8x8xf32> to vector<1x8x8xf32>
    %18 = arith.addf %15, %17 : vector<1x8x8xf32>
    %c0_6 = arith.constant 0 : index
    %c0_7 = arith.constant 0 : index
    %c0_8 = arith.constant 0 : index
    %19 = vector.load %arg3[%c0_6, %c0_7, %c0_8] : memref<1x8x8xf32, #tpu.memory_space<vmem>>, vector<1x8x8xf32>
    tpu.vector_store %arg3[%c0_6, %c0_7, %c0_8], %18 {strides = array<i32>} : memref<1x8x8xf32, #tpu.memory_space<vmem>>, vector<1x8x8xf32>,
    return
  }
  func.func @transform_0(%arg0: i32, %arg1: i32) -> (i32, i32) {
    %c1_i32 = arith.constant 1 : i32
    %0 = arith.muli %arg0, %c1_i32 : i32
    %1 = arith.addi %0, %arg1 : i32
    %c0_i32 = arith.constant 0 : i32
    %2 = arith.minsi %1, %c0_i32 : i32
    %c0_i32_0 = arith.constant 0 : i32
    %c0_i32_1 = arith.constant 0 : i32
    return %c0_i32_0, %2 : i32, i32
  }
  func.func @transform_1(%arg0: i32, %arg1: i32) -> (i32, i32, i32) {
    %c0_i32 = arith.constant 0 : i32
    %c0_i32_0 = arith.constant 0 : i32
    %c0_i32_1 = arith.constant 0 : i32
    return %arg0, %c0_i32, %c0_i32_0 : i32, i32, i32
  }
}

</mosaic_0001>

<llo_original>
// kernel: tpu_custom_call.1
$region0: #{tpu_custom_call.1}
  #allocation0 [shape = 'u32[]', space=smem, size = 0x4, offset = 0x4, fixed_abs, tag = 'smem constant byte address 0x4 - core index']
  #allocation1 [shape = 'u32[144,128]{1,0:T(1,128)}', space=vmem, size = 0x12000, scoped, tag = 'internal scratch']
  %s0 = inlined_call_operand.hbm [shape: f32[8,32], index: 0, kind: input, shape index: {}]
  %s1 = inlined_call_operand.hbm [shape: f32[1,8,8], index: 1, kind: output, shape index: {}]
  %s2 = sld [smem:[#allocation0]]
  $region22: #{tpu_custom_call.1} parent=0
    _
  %s4 = ssub.s32 1, %s2
  %s5 = scalar_select 0, %s4, %s2
  $region1: #{tpu_custom_call.1} parent=0
    #allocation2 [shape = 'u8[4096]{0}', space=vmem, size = 0x1000, scoped, tag = 'input window, operand 0, single buffered']
    #allocation3 [shape = 's32[1]{0}', space=sflag, size = 0x4, scoped, tag = 'scoped memory for tpu_custom_call.1']
    #allocation4 [shape = 's32[1]{0}', space=sflag, size = 0x4, scoped, tag = 'scoped memory for tpu_custom_call.1']
    #allocation5 [shape = 'u8[4096]{0}', space=vmem, size = 0x1000, scoped, tag = 'output window, operand 0, single buffered']
    %6 = vsyncpa [#allocation3], 0
    %7 = vsyncpa [#allocation4], 0
    // Predicated region
    $region2: #{tpu_custom_call.1} parent=1 // pred_check
      _
    $region3: #{tpu_custom_call.1} parent=1 // pred_check_branch
      %9 = sbr.rel (0) target = $region5
    $region4: #{tpu_custom_call.1} parent=1 // pred_region
      %s10 = sadd.s32 0, 0
      %p11 = scmp.lt.s32.totalorder %s10, 0
      %s12 = scalar_select %p11, %s10, 0
      %s14 = ssub.s32 128, 128
      %15 = vsyncadd [#allocation3], %s14
      %s16 = smul.addr %s12, 128
      %s17 = scalar_lea.hbm %s0, %s16
      %s19 = sshll.u32 [#allocation2], 4
      %s20 = int_to_ptr.vmem [resolvable:$true] %s19
      %22 = dma.hbm_to_vmem [thread:$0]  %s17, 128, %s20, [#allocation3]
    $region5: #{tpu_custom_call.1} parent=1 // pred_fallthru
      _
    // Predicated region
    $region6: #{tpu_custom_call.1} parent=1 // pred_check
      _
    $region7: #{tpu_custom_call.1} parent=1 // pred_check_branch
      %24 = sbr.rel (0) target = $region9
    $region8: #{tpu_custom_call.1} parent=1 // pred_region
      %25 = dma.done [#allocation3], 128
    $region9: #{tpu_custom_call.1} parent=1 // pred_fallthru
      _
    %s26 = sadd.s32 0, 0
    %p27 = scmp.lt.s32.totalorder %s26, 0
    %s28 = scalar_select %p27, %s26, 0
    %p29 = scmp.eq.s32.totalorder 0, 0
    // Predicated region
    $region10: #{tpu_custom_call.1} parent=1 // pred_check
      %p30 = pneg %p29
    $region11: #{tpu_custom_call.1} parent=1 // pred_check_branch
      %32 = sbr.rel (%p30) target = $region13
    $region12: #{tpu_custom_call.1} parent=1 // pred_region
      %vm33 = vcmask 64512
      %34 = vst.msk [vmem:[#allocation5] sm:$0xff] %vm33, 0.0
    $region13: #{tpu_custom_call.1} parent=1 // pred_fallthru
      _
    %v35 = vld [vmem:[#allocation2] sm:$0xff]
    %s36 = sadd.s32 0, 0
    %s37 = smul.u32 %s36, 128
    %v38 = vlaneseq
    %v39 = vand.u32 %v38, 127
    %s40 = ssub.s32 32, %s37
    %v41 = vstv %s40
    %vm42 = vcmp.lt.s32.totalorder %v39, %v41
    %v43 = vsel %vm42, 1, 0
    %vm44 = vcmp.eq.s32.totalorder %v43, 1
    %v45 = vsel %vm44, %v35, 0.0
    %v46 = vld [vmem:[#allocation5] sm:$0xff]
    %47 = vmatprep.subr.mxu0 0.0
    %48 = vmatpush1.xpose.msra.mxu0 %v45
    %49 = vmatprep.subr.mxu0 0.0
    %50 = vmatpush1.xpose.msra.mxu0 0.0
    %51 = vmatprep.subr.mxu0 0.0
    %52 = vmatpush1.xpose.msra.mxu0 0.0
    %53 = vmatprep.subr.mxu0 0.0
    %54 = vmatpush1.xpose.msra.mxu0 0.0
    %55 = vmatprep.subr.mxu0 0.0
    %56 = vmatpush1.xpose.msra.mxu0 0.0
    %57 = vmatprep.subr.mxu0 0.0
    %58 = vmatpush1.xpose.msra.mxu0 0.0
    %59 = vmatprep.subr.mxu0 0.0
    %60 = vmatpush1.xpose.msra.mxu0 0.0
    %61 = vmatprep.subr.mxu0 0.0
    %62 = vmatpush1.xpose.msra.mxu0 0.0
    %63 = vmatprep.subr.mxu0 0.0
    %64 = vmatpush1.xpose.msra.mxu0 0.0
    %65 = vmatprep.subr.mxu0 0.0
    %66 = vmatpush1.xpose.msra.mxu0 0.0
    %67 = vmatprep.subr.mxu0 0.0
    %68 = vmatpush1.xpose.msra.mxu0 0.0
    %69 = vmatprep.subr.mxu0 0.0
    %70 = vmatpush1.xpose.msra.mxu0 0.0
    %71 = vmatprep.subr.mxu0 0.0
    %72 = vmatpush1.xpose.msra.mxu0 0.0
    %73 = vmatprep.subr.mxu0 0.0
    %74 = vmatpush1.xpose.msra.mxu0 0.0
    %75 = vmatprep.subr.mxu0 0.0
    %76 = vmatpush1.xpose.msra.mxu0 0.0
    %77 = vmatprep.subr.mxu0 0.0
    %78 = vmatpush1.xpose.msra.mxu0 0.0
    %79 = vmatprep.subr.mxu0 0.0
    %80 = vmatpush1.xpose.msra.mxu0 0.0
    %81 = vmatprep.subr.mxu0 0.0
    %82 = vmatpush1.xpose.msra.mxu0 0.0
    %83 = vmatprep.subr.mxu0 0.0
    %84 = vmatpush1.xpose.msra.mxu0 0.0
    %85 = vmatprep.subr.mxu0 0.0
    %86 = vmatpush1.xpose.msra.mxu0 0.0
    %87 = vmatprep.subr.mxu0 0.0
    %88 = vmatpush1.xpose.msra.mxu0 0.0
    %89 = vmatprep.subr.mxu0 0.0
    %90 = vmatpush1.xpose.msra.mxu0 0.0
    %91 = vmatprep.subr.mxu0 0.0
    %92 = vmatpush1.xpose.msra.mxu0 0.0
    %93 = vmatprep.subr.mxu0 0.0
    %94 = vmatpush1.xpose.msra.mxu0 0.0
    %95 = vmatprep.subr.mxu0 0.0
    %96 = vmatpush1.xpose.msra.mxu0 0.0
    %97 = vmatprep.subr.mxu0 0.0
    %98 = vmatpush1.xpose.msra.mxu0 0.0
    %99 = vmatprep.subr.mxu0 0.0
    %100 = vmatpush1.xpose.msra.mxu0 0.0
    %101 = vmatprep.subr.mxu0 0.0
    %102 = vmatpush1.xpose.msra.mxu0 0.0
    %103 = vmatprep.subr.mxu0 0.0
    %104 = vmatpush1.xpose.msra.mxu0 0.0
    %105 = vmatprep.subr.mxu0 0.0
    %106 = vmatpush1.xpose.msra.mxu0 0.0
    %107 = vmatprep.subr.mxu0 0.0
    %108 = vmatpush1.xpose.msra.mxu0 0.0
    %109 = vmatprep.subr.mxu0 0.0
    %110 = vmatpush1.xpose.msra.mxu0 0.0
    %111 = vmatprep.mubr.f32.mxu0 0.0
    %112 = vmatmul.mubr.f32.gmra.mrb[0].mxu0 %v45
    %v113 = vpop.f32.mrb[0].mxu0
    %v114 = vadd.f32 0.0, %v113
    %v115 = vpop.f32.mrb[0].mxu0
    %116 = vdwg.mxu0
    %v117 = vadd.f32 %v46, %v114
    %vm118 = vcmask 64512
    %119 = vst.msk [vmem:[#allocation5] sm:$0xff] %vm118, %v117
    // Predicated region
    $region14: #{tpu_custom_call.1} parent=1 // pred_check
      _
    $region15: #{tpu_custom_call.1} parent=1 // pred_check_branch
      %121 = sbr.rel (0) target = $region17
    $region16: #{tpu_custom_call.1} parent=1 // pred_region
      %s123 = ssub.s32 128, 128
      %124 = vsyncadd [#allocation4], %s123
      %s126 = sshll.u32 [#allocation5], 4
      %s127 = int_to_ptr.vmem [resolvable:$true] %s126
      %129 = dma.vmem_to_hbm [thread:$0]  %s127, 128, %s1, [#allocation4]
    $region17: #{tpu_custom_call.1} parent=1 // pred_fallthru
      _
    // Predicated region
    $region18: #{tpu_custom_call.1} parent=1 // pred_check
      _
    $region19: #{tpu_custom_call.1} parent=1 // pred_check_branch
      %131 = sbr.rel (0) target = $region21
    $region20: #{tpu_custom_call.1} parent=1 // pred_region
      %132 = dma.done [#allocation4], 128
    $region21: #{tpu_custom_call.1} parent=1 // pred_fallthru
      _
    %133 = vsyncpa [#allocation3], 1
    %134 = vsyncpa [#allocation4], 1

</llo_original>
